<compile_context>
chip_gen: v7x
topology: tpu7x:2x2x1
jax: 0.10.0
libtpu: 0.0.40
codegen_flags: <defaults>
</compile_context>

<pallas_src>
import functools
import math

import jax
import jax.numpy as jnp
from jax import lax
from jax.experimental import pallas as pl
from jax.experimental.pallas import tpu as pltpu


def _angular_head_kernel(x_ref, w_ref, cos_ref, phi_ref, inv_wlen_ref, *, m: int):
    """Fused angular head for one (TM batch) x (TN classes) tile; K resident."""
    bi = pl.program_id(1)                 # inner (batch) grid axis
    w = w_ref[...]                        # (K, TN) f32

    # Per-class-tile weight normalization, computed once per weight tile and cached
    # in VMEM scratch (the W block index only depends on the outer grid axis).
    @pl.when(bi == 0)
    def _():
        col_sumsq = jnp.sum(w * w, axis=0, keepdims=True)         # (1, TN)
        inv_wlen_ref[...] = lax.rsqrt(col_sumsq)                  # 1 / ||w_col||

    x = x_ref[...]                                                # (TM, K)
    row_sumsq = jnp.sum(x * x, axis=1, keepdims=True)             # (TM, 1)
    inv_xlen = lax.rsqrt(row_sumsq)                               # EUP rsqrt
    xlen = row_sumsq * inv_xlen                                   # == ||x||_2 per row

    # MXU matmul, f32 accumulation.
    logits = jnp.dot(x, w, preferred_element_type=jnp.float32)    # (TM, TN)
    cos_theta = jnp.clip(logits * inv_xlen * inv_wlen_ref[...], -1.0, 1.0)

    # cos(m * theta) via the Chebyshev polynomial (self.mlambda[m]); m is static.
    c = cos_theta
    if m == 0:
        cos_m_theta = jnp.ones_like(c)
    elif m == 1:
        cos_m_theta = c
    elif m == 2:
        cos_m_theta = 2.0 * c * c - 1.0
    elif m == 3:
        cos_m_theta = (4.0 * c * c - 3.0) * c
    elif m == 4:
        c2 = c * c
        cos_m_theta = 8.0 * c2 * c2 - 8.0 * c2 + 1.0
    else:  # m == 5
        c2 = c * c
        cos_m_theta = ((16.0 * c2 - 20.0) * c2 + 5.0) * c

    # k = floor(m * acos(c) / pi) == #{j in 1..m : c <= cos(j*pi/m)} since acos is
    # monotone decreasing on [-1, 1].  Integer counting + low-bit sign avoids any
    # in-kernel arccos and the float mod.
    k = jnp.zeros(c.shape, jnp.int32)
    for j in range(1, m + 1):
        k = k + (c <= math.cos(j * math.pi / m)).astype(jnp.int32)
    sign = (1 - 2 * (k & 1)).astype(jnp.float32)                  # (-1) ** k
    phi_theta = sign * cos_m_theta - 2.0 * k.astype(jnp.float32)

    # Re-scale by ||x|| per row (the ".view(-1, 1)" broadcasts in the reference).
    cos_ref[...] = (cos_theta * xlen).astype(cos_ref.dtype)
    phi_ref[...] = (phi_theta * xlen).astype(phi_ref.dtype)


def _round_up(v, d):
    return -(-v // d) * d


def make_angular_cls_head(fc_weight, m, *, block_b=256, block_c=512):
    """One-time setup: transpose/pad fc.weight once, return a jitted forward.

    fc_weight: (num_classes, in_channels) f32 (PyTorch nn.Linear layout).
    Returns forward(x) -> (cos_theta, phi_theta), each (batch, num_classes).
    Default tile sizes (256, 512) keep the double-buffered f32 working set well
    under v7x's 64 MiB VMEM; raise block_c on v5e/v6e (128 MiB) for bigger tiles.
    """
    if not 0 <= m <= 5:
        raise ValueError("m must be in [0, 5]")
    num_classes, in_channels = fc_weight.shape

    # Pre-transpose ONCE (avoids re-materializing the (K, C) transpose in HBM on
    # every forward) and pad the class axis so stores are lane-dense (x128) and
    # tiles divide evenly.
    tn = min(block_c, _round_up(num_classes, 128))
    c_pad = _round_up(num_classes, tn)
    w_t = jnp.transpose(fc_weight).astype(jnp.float32)            # (K, C)
    if c_pad != num_classes:
        w_t = jnp.pad(w_t, ((0, 0), (0, c_pad - num_classes)))
    w_t = jax.device_put(w_t)

    @jax.jit
    def _fwd(x, w):
        batch, k_dim = x.shape
        tm = min(block_b, _round_up(batch, 8))
        b_pad = _round_up(batch, tm)
        if b_pad != batch:
            x = jnp.pad(x, ((0, b_pad - batch), (0, 0)))

        # Class axis outermost: each weight tile is DMA'd once and reused across
        # all batch tiles.
        grid = (c_pad // tn, b_pad // tm)

        # Explicit VMEM budget: 2x-buffered f32 tiles + scratch + headroom,
        # clamped under v7x's 64 MiB physical VMEM.
        vmem_bytes = 4 * (2 * tm * k_dim + 2 * k_dim * tn + 4 * tm * tn + 8 * tn)
        vmem_limit = int(min(max(vmem_bytes + (8 << 20), 32 << 20), 48 << 20))

        cost = pl.CostEstimate(
            flops=2 * b_pad * k_dim * c_pad + 16 * b_pad * c_pad,
            transcendentals=b_pad * (c_pad // tn) + c_pad,
            bytes_accessed=4 * (b_pad * k_dim * (c_pad // tn)
                                + k_dim * c_pad + 2 * b_pad * c_pad),
        )

        kernel = functools.partial(_angular_head_kernel, m=m)
        cos_p, phi_p = pl.pallas_call(
            kernel,
            out_shape=(
                jax.ShapeDtypeStruct((b_pad, c_pad), jnp.float32),
                jax.ShapeDtypeStruct((b_pad, c_pad), jnp.float32),
            ),
            grid_spec=pltpu.PrefetchScalarGridSpec(
                num_scalar_prefetch=0,
                grid=grid,
                in_specs=[
                    pl.BlockSpec((tm, k_dim), lambda ci, bi: (bi, 0)),   # x
                    pl.BlockSpec((k_dim, tn), lambda ci, bi: (0, ci)),   # w (K, C)
                ],
                out_specs=[
                    pl.BlockSpec((tm, tn), lambda ci, bi: (bi, ci)),     # cos_theta
                    pl.BlockSpec((tm, tn), lambda ci, bi: (bi, ci)),     # phi_theta
                ],
                scratch_shapes=[pltpu.VMEM((1, tn), jnp.float32)],       # 1/||w_col||
            ),
            compiler_params=pltpu.CompilerParams(
                # Class axis parallel (v7x 2-TC megacore); batch axis stays
                # "arbitrary" because the per-class-tile scratch is filled at bi==0.
                dimension_semantics=("parallel", "arbitrary"),
                vmem_limit_bytes=vmem_limit,
            ),
            cost_estimate=cost,
        )(x, w)
        return cos_p[:batch, :num_classes], phi_p[:batch, :num_classes]

    return lambda x: _fwd(x, w_t)


def _reference(x, fc_weight, m):
    """Pure-JAX reference mirroring the PyTorch forward (sanity check)."""
    w = fc_weight.T
    col_norm = jnp.sqrt(jnp.sum(w * w, axis=0, keepdims=True))
    ww = w * jnp.where(col_norm > 1e-5, 1e-5 / col_norm, 1.0) * 1e5
    xlen = jnp.sqrt(jnp.sum(x * x, axis=1, keepdims=True))
    wlen = jnp.sqrt(jnp.sum(ww * ww, axis=0, keepdims=True))
    logits = jnp.dot(x, ww, precision=jax.lax.Precision.HIGHEST)
    cos_theta = jnp.clip(logits / xlen / wlen, -1.0, 1.0)
    mlambda = [
        lambda t: t ** 0,
        lambda t: t ** 1,
        lambda t: 2 * t ** 2 - 1,
        lambda t: 4 * t ** 3 - 3 * t,
        lambda t: 8 * t ** 4 - 8 * t ** 2 + 1,
        lambda t: 16 * t ** 5 - 20 * t ** 3 + 5 * t,
    ]
    cos_m_theta = mlambda[m](cos_theta)
    theta = jnp.arccos(cos_theta)
    k = jnp.floor(m * theta / 3.14159265)
    phi_theta = (-1.0) ** k * cos_m_theta - 2 * k
    return cos_theta * xlen, phi_theta * xlen


if __name__ == "__main__":
    # Small shapes consistent with the module: batch=16, in_channels=64,
    # num_classes=300, m=4.  Small block sizes are chosen so the demo exercises
    # the 2-D grid (3 class tiles x 2 batch tiles), the class padding (300 -> 384)
    # and the per-class-tile scratch reuse across batch tiles.
    B, IN_CHANNELS, NUM_CLASSES, M = 16, 64, 300, 4

    key = jax.random.PRNGKey(0)
    kx, kw = jax.random.split(key)
    x = jax.random.normal(kx, (B, IN_CHANNELS), dtype=jnp.float32)

    # fc.weight ~ xavier_normal_ (shape (num_classes, in_channels)); bias is
    # zero-initialized and unused in the forward.
    xavier_std = math.sqrt(2.0 / (IN_CHANNELS + NUM_CLASSES))
    fc_weight = xavier_std * jax.random.normal(
        kw, (NUM_CLASSES, IN_CHANNELS), dtype=jnp.float32
    )

    head = make_angular_cls_head(fc_weight, M, block_b=8, block_c=128)
    cos_theta, phi_theta = head(x)
    jax.block_until_ready((cos_theta, phi_theta))
    assert cos_theta.shape == (B, NUM_CLASSES)
    assert phi_theta.shape == (B, NUM_CLASSES)

    ref_cos, ref_phi = _reference(x, fc_weight, M)
    assert jnp.allclose(cos_theta, ref_cos, atol=1e-4, rtol=1e-4)

    # phi_theta is discontinuous in k exactly at cos_theta == cos(j*pi/m); f32
    # rounding-order differences can legitimately flip k on that measure-zero set,
    # so exclude a tiny band around those edges from the element-wise check.
    xlen = jnp.sqrt(jnp.sum(x * x, axis=1, keepdims=True))
    c_ref = jnp.clip(ref_cos / xlen, -1.0, 1.0)
    edge = jnp.zeros_like(c_ref, dtype=bool)
    for j in range(1, M + 1):
        edge = edge | (jnp.abs(c_ref - math.cos(j * math.pi / M)) < 1e-5)
    ok = jnp.isclose(phi_theta, ref_phi, atol=1e-4, rtol=1e-4) | edge
    assert bool(jnp.all(ok))

    print("KERNEL_OK")
</pallas_src>

<mosaic_0001>
module attributes {stable_mosaic.version = 11 : i64} {
  func.func @_angular_head_kernel(%arg0: i32, %arg1: i32, %arg2: memref<8x64xf32, #tpu.memory_space<vmem>>, %arg3: memref<64x128xf32, #tpu.memory_space<vmem>>, %arg4: memref<8x128xf32, #tpu.memory_space<vmem>>, %arg5: memref<8x128xf32, #tpu.memory_space<vmem>>, %arg6: memref<1x128xf32, #tpu.memory_space<vmem>>) attributes {dimension_semantics = [#tpu.dimension_semantics<parallel>, #tpu.dimension_semantics<arbitrary>], iteration_bounds = array<i64: 3, 2>, scalar_prefetch = 0 : i64, scratch_operands = 1 : i64, tpu.core_type = #tpu.core_type<tc>, window_params = [{transform_indices = @transform_0, window_bounds = array<i64: 8, 64>}, {transform_indices = @transform_1, window_bounds = array<i64: 64, 128>}, {transform_indices = @transform_2, window_bounds = array<i64: 8, 128>}, {transform_indices = @transform_3, window_bounds = array<i64: 8, 128>}]} {
    %c0 = arith.constant 0 : index
    %c0_0 = arith.constant 0 : index
    %0 = vector.load %arg3[%c0, %c0_0] : memref<64x128xf32, #tpu.memory_space<vmem>>, vector<64x128xf32>
    %c0_i32 = arith.constant 0 : i32
    %1 = arith.cmpi eq, %arg1, %c0_i32 : i32
    %2 = arith.extui %1 : i1 to i32
    %c0_i32_1 = arith.constant 0 : i32
    %3 = arith.cmpi ne, %2, %c0_i32_1 : i32
    scf.if %3 {
      %64 = arith.mulf %0, %0 : vector<64x128xf32>
      %cst_23 = arith.constant dense<0.000000e+00> : vector<128xf32>
      %65 = vector.multi_reduction <add>, %64, %cst_23 [0] : vector<64x128xf32> to vector<128xf32>
      %66 = vector.shape_cast %65 : vector<128xf32> to vector<1x128xf32>
      %67 = math.rsqrt %66 : vector<1x128xf32>
      %c0_24 = arith.constant 0 : index
      %c0_25 = arith.constant 0 : index
      %68 = vector.load %arg6[%c0_24, %c0_25] : memref<1x128xf32, #tpu.memory_space<vmem>>, vector<1x128xf32>
      tpu.vector_store %arg6[%c0_24, %c0_25], %67 {strides = array<i32>} : memref<1x128xf32, #tpu.memory_space<vmem>>, vector<1x128xf32>,
    } else {
    }
    %c0_2 = arith.constant 0 : index
    %c0_3 = arith.constant 0 : index
    %4 = vector.load %arg2[%c0_2, %c0_3] : memref<8x64xf32, #tpu.memory_space<vmem>>, vector<8x64xf32>
    %5 = arith.mulf %4, %4 : vector<8x64xf32>
    %cst = arith.constant dense<0.000000e+00> : vector<8xf32>
    %6 = vector.multi_reduction <add>, %5, %cst [1] : vector<8x64xf32> to vector<8xf32>
    %7 = vector.shape_cast %6 : vector<8xf32> to vector<8x1xf32>
    %8 = math.rsqrt %7 : vector<8x1xf32>
    %9 = arith.mulf %7, %8 : vector<8x1xf32>
    %cst_4 = arith.constant dense<0.000000e+00> : vector<8x128xf32>
    %10 = tpu.matmul %4, %0, %cst_4 {dimension_numbers = #tpu.dot_dimension_numbers<[1], [0], [0], [1], [0, 0, 1, 1], [], []>} : vector<8x64xf32>, vector<64x128xf32>, vector<8x128xf32> -> vector<8x128xf32>
    %11 = vector.broadcast %8 : vector<8x1xf32> to vector<8x128xf32>
    %12 = arith.mulf %10, %11 : vector<8x128xf32>
    %c0_5 = arith.constant 0 : index
    %c0_6 = arith.constant 0 : index
    %13 = vector.load %arg6[%c0_5, %c0_6] : memref<1x128xf32, #tpu.memory_space<vmem>>, vector<1x128xf32>
    %14 = vector.broadcast %13 : vector<1x128xf32> to vector<8x128xf32>
    %15 = arith.mulf %12, %14 : vector<8x128xf32>
    %cst_7 = arith.constant -1.000000e+00 : f32
    %cst_8 = arith.constant 1.000000e+00 : f32
    %16 = vector.broadcast %cst_7 : f32 to vector<8x128xf32>
    %17 = arith.maximumf %16, %15 : vector<8x128xf32>
    %18 = vector.broadcast %cst_8 : f32 to vector<8x128xf32>
    %19 = arith.minimumf %18, %17 : vector<8x128xf32>
    %20 = arith.mulf %19, %19 : vector<8x128xf32>
    %cst_9 = arith.constant 8.000000e+00 : f32
    %21 = vector.broadcast %cst_9 : f32 to vector<8x128xf32>
    %22 = arith.mulf %21, %20 : vector<8x128xf32>
    %23 = arith.mulf %22, %20 : vector<8x128xf32>
    %cst_10 = arith.constant 8.000000e+00 : f32
    %24 = vector.broadcast %cst_10 : f32 to vector<8x128xf32>
    %25 = arith.mulf %24, %20 : vector<8x128xf32>
    %26 = arith.subf %23, %25 : vector<8x128xf32>
    %cst_11 = arith.constant 1.000000e+00 : f32
    %27 = vector.broadcast %cst_11 : f32 to vector<8x128xf32>
    %28 = arith.addf %26, %27 : vector<8x128xf32>
    %c0_i32_12 = arith.constant 0 : i32
    %29 = vector.broadcast %c0_i32_12 : i32 to vector<8x128xi32>
    %cst_13 = arith.constant 0.707106769 : f32
    %30 = vector.broadcast %cst_13 : f32 to vector<8x128xf32>
    %31 = arith.cmpf ole, %19, %30 : vector<8x128xf32>
    %32 = arith.extui %31 : vector<8x128xi1> to vector<8x128xi32>
    %33 = arith.addi %29, %32 : vector<8x128xi32>
    %cst_14 = arith.constant 6.12323426E-17 : f32
    %34 = vector.broadcast %cst_14 : f32 to vector<8x128xf32>
    %35 = arith.cmpf ole, %19, %34 : vector<8x128xf32>
    %36 = arith.extui %35 : vector<8x128xi1> to vector<8x128xi32>
    %37 = arith.addi %33, %36 : vector<8x128xi32>
    %cst_15 = arith.constant -0.707106769 : f32
    %38 = vector.broadcast %cst_15 : f32 to vector<8x128xf32>
    %39 = arith.cmpf ole, %19, %38 : vector<8x128xf32>
    %40 = arith.extui %39 : vector<8x128xi1> to vector<8x128xi32>
    %41 = arith.addi %37, %40 : vector<8x128xi32>
    %cst_16 = arith.constant -1.000000e+00 : f32
    %42 = vector.broadcast %cst_16 : f32 to vector<8x128xf32>
    %43 = arith.cmpf ole, %19, %42 : vector<8x128xf32>
    %44 = arith.extui %43 : vector<8x128xi1> to vector<8x128xi32>
    %45 = arith.addi %41, %44 : vector<8x128xi32>
    %c1_i32 = arith.constant 1 : i32
    %46 = vector.broadcast %c1_i32 : i32 to vector<8x128xi32>
    %47 = arith.andi %45, %46 : vector<8x128xi32>
    %c2_i32 = arith.constant 2 : i32
    %48 = vector.broadcast %c2_i32 : i32 to vector<8x128xi32>
    %49 = arith.muli %48, %47 : vector<8x128xi32>
    %c1_i32_17 = arith.constant 1 : i32
    %50 = vector.broadcast %c1_i32_17 : i32 to vector<8x128xi32>
    %51 = arith.subi %50, %49 : vector<8x128xi32>
    %52 = arith.sitofp %51 : vector<8x128xi32> to vector<8x128xf32>
    %53 = arith.mulf %52, %28 : vector<8x128xf32>
    %54 = arith.sitofp %45 : vector<8x128xi32> to vector<8x128xf32>
    %cst_18 = arith.constant 2.000000e+00 : f32
    %55 = vector.broadcast %cst_18 : f32 to vector<8x128xf32>
    %56 = arith.mulf %55, %54 : vector<8x128xf32>
    %57 = arith.subf %53, %56 : vector<8x128xf32>
    %58 = vector.broadcast %9 : vector<8x1xf32> to vector<8x128xf32>
    %59 = arith.mulf %19, %58 : vector<8x128xf32>
    %c0_19 = arith.constant 0 : index
    %c0_20 = arith.constant 0 : index
    %60 = vector.load %arg4[%c0_19, %c0_20] : memref<8x128xf32, #tpu.memory_space<vmem>>, vector<8x128xf32>
    tpu.vector_store %arg4[%c0_19, %c0_20], %59 {strides = array<i32>} : memref<8x128xf32, #tpu.memory_space<vmem>>, vector<8x128xf32>,
    %61 = vector.broadcast %9 : vector<8x1xf32> to vector<8x128xf32>
    %62 = arith.mulf %57, %61 : vector<8x128xf32>
    %c0_21 = arith.constant 0 : index
    %c0_22 = arith.constant 0 : index
    %63 = vector.load %arg5[%c0_21, %c0_22] : memref<8x128xf32, #tpu.memory_space<vmem>>, vector<8x128xf32>
    tpu.vector_store %arg5[%c0_21, %c0_22], %62 {strides = array<i32>} : memref<8x128xf32, #tpu.memory_space<vmem>>, vector<8x128xf32>,
    return
  }
  func.func @transform_0(%arg0: i32, %arg1: i32) -> (i32, i32) {
    %c0_i32 = arith.constant 0 : i32
    %c0_i32_0 = arith.constant 0 : i32
    return %arg1, %c0_i32 : i32, i32
  }
  func.func @transform_1(%arg0: i32, %arg1: i32) -> (i32, i32) {
    %c0_i32 = arith.constant 0 : i32
    %c0_i32_0 = arith.constant 0 : i32
    return %c0_i32, %arg0 : i32, i32
  }
  func.func @transform_2(%arg0: i32, %arg1: i32) -> (i32, i32) {
    %c0_i32 = arith.constant 0 : i32
    return %arg1, %arg0 : i32, i32
  }
  func.func @transform_3(%arg0: i32, %arg1: i32) -> (i32, i32) {
    %c0_i32 = arith.constant 0 : i32
    return %arg1, %arg0 : i32, i32
  }
}

</mosaic_0001>

<llo_original>
// kernel: _fwd.1
$region0: #{_fwd.1}
  #allocation0 [shape = 'u32[]', space=smem, size = 0x4, offset = 0x4, fixed_abs, tag = 'smem constant byte address 0x4 - core index']
  #allocation1 [shape = 'u32[144,128]{1,0:T(1,128)}', space=vmem, size = 0x12000, scoped, tag = 'internal scratch']
  #allocation2 [shape = 'f32[1,128]{1,0:T(1,128)}', space=vmem, size = 0x200, scoped, tag = 'scratch operand']
  %s0 = inlined_call_operand.hbm [shape: f32[16,64], index: 0, kind: input, shape index: {}]
  %s1 = inlined_call_operand.hbm [shape: f32[64,384], index: 1, kind: input, shape index: {}]
  %s2 = inlined_call_operand.hbm [shape: f32[16,384], index: 2, kind: output, shape index: {0}]
  %s3 = inlined_call_operand.hbm [shape: f32[16,384], index: 3, kind: output, shape index: {1}]
  %4 = xla_tuple %s2, %s3
  %s5 = sld [smem:[#allocation0]]
  $region61: #{_fwd.1} parent=0
    _
  %s7 = ssub.s32 1, %s5
  %s8 = scalar_select 0, %s7, %s5
  $region1: #{_fwd.1} parent=0
    #allocation3 [shape = 'u8[8192]{0}', space=vmem, size = 0x2000, scoped, tag = 'input window, operand 0']
    #allocation4 [shape = 's32[2]{0}', space=sflag, size = 0x8, scoped, tag = 'scoped memory for _fwd.1']
    #allocation5 [shape = 's32[2]{0}', space=sflag, size = 0x8, scoped, tag = 'scoped memory for _fwd.1']
    #allocation6 [shape = 'u8[65536]{0}', space=vmem, size = 0x10000, scoped, tag = 'input window, operand 1']
    #allocation7 [shape = 's32[2]{0}', space=sflag, size = 0x8, scoped, tag = 'scoped memory for _fwd.1']
    #allocation8 [shape = 'u8[8192]{0}', space=vmem, size = 0x2000, scoped, tag = 'output window, operand 0']
    #allocation9 [shape = 'u8[8192]{0}', space=vmem, size = 0x2000, scoped, tag = 'output window, operand 1']
    #allocation10 [shape = 's32[2]{0}', space=sflag, size = 0x8, scoped, tag = 'scoped memory for _fwd.1']
    %9 = vsyncpa [#allocation4], 0
    %s10 = scalar_lea.sflag [#allocation4], 1
    %11 = vsyncpa %s10, 0
    %12 = vsyncpa [#allocation7], 0
    %s13 = scalar_lea.sflag [#allocation7], 1
    %14 = vsyncpa %s13, 0
    %15 = vsyncpa [#allocation5], 0
    %s16 = scalar_lea.sflag [#allocation5], 1
    %17 = vsyncpa %s16, 0
    %18 = vsyncpa [#allocation10], 0
    %s19 = scalar_lea.sflag [#allocation10], 1
    %20 = vsyncpa %s19, 0
    loop: start=0, step=1, limit=8
    $region2: #{_fwd.1} parent=1 // loop_pre_header
      _
    $region3: #{_fwd.1} parent=1 // loop_header
      %s22 = sphi 0, %s26
      %p23 = scmp.ge.s32.totalorder %s22, 8
      %s29 = sphi 0, %s41
      %s30 = sphi 0, %s37
      %s31 = sphi 0, %s29
      %s32 = sphi 0, %s30
      %s33 = sphi 0, %s31
      %s34 = sphi 0, %s32
      %s44 = sphi 0, %s46
      %s47 = sphi 0, %s44
      %s48 = sphi 0, %s47
      %s64 = sphi 0, %s48
      %s70 = sphi 0, %s72
      %s73 = sphi 0, %s70
      %s74 = sphi 0, %s73
      %s90 = sphi 0, %s74
      %s98 = sphi 0, %s100
      %s101 = sphi 0, %s98
      %s102 = sphi 0, %s101
      %s118 = sphi 0, %s102
      %s126 = sphi 0, %s128
      %s129 = sphi 0, %s126
      %s130 = sphi 0, %s129
      %s146 = sphi 0, %s130
    $region4: #{_fwd.1} parent=1 // loop_header_branch
      %25 = sbr.rel (%p23) target = $region8
    $region5: #{_fwd.1} parent=1 // loop_body
      %s27 = ssub.s32 %s22, 1
      %s28 = ssub.s32 %s22, 2
      %s35 = sadd.s32 1, %s30
      %p36 = scmp.ge.s32.totalorder %s35, 2
      %s37 = scalar_select %p36, 0, %s35
      %s38 = sadd.s32 1, %s29
      %s39 = scalar_select %p36, %s38, %s29
      %p40 = scmp.ge.s32.totalorder %s39, 3
      %s41 = scalar_select %p40, 0, %s39
      %s42 = ssub.s32 %s30, %s37
      %p43 = scmp.eq.s32.totalorder %s42, 0
      %s45 = sadd.s32 %s44, 1
      %s46 = scalar_select %p43, %s44, %s45
      %p49 = pneg %p43
      %p50 = scmp.eq.s32.totalorder %s22, 5
      %p51 = por %p49, %p50
      %p52 = scmp.ne.s32.totalorder %s44, %s47
      %p53 = scmp.eq.s32.totalorder %s22, 0
      %p54 = por %p52, %p53
      %p55 = scmp.ne.s32.totalorder %s44, %s47
      %p56 = scmp.eq.s32.totalorder %s27, 5
      %p57 = por %p55, %p56
      %p58 = scmp.ne.s32.totalorder %s47, %s48
      %p59 = scmp.eq.s32.totalorder %s27, 0
      %p60 = por %p58, %p59
      %p61 = scmp.ne.s32.totalorder %s47, %s48
      %p62 = scmp.eq.s32.totalorder %s28, 5
      %p63 = por %p61, %p62
      %p65 = scmp.ne.s32.totalorder %s48, %s64
      %p66 = scmp.eq.s32.totalorder %s28, 0
      %p67 = por %p65, %p66
      %s68 = ssub.s32 %s29, %s41
      %p69 = scmp.eq.s32.totalorder %s68, 0
      %s71 = sadd.s32 %s70, 1
      %s72 = scalar_select %p69, %s70, %s71
      %p75 = pneg %p69
      %p76 = scmp.eq.s32.totalorder %s22, 5
      %p77 = por %p75, %p76
      %p78 = scmp.ne.s32.totalorder %s70, %s73
      %p79 = scmp.eq.s32.totalorder %s22, 0
      %p80 = por %p78, %p79
      %p81 = scmp.ne.s32.totalorder %s70, %s73
      %p82 = scmp.eq.s32.totalorder %s27, 5
      %p83 = por %p81, %p82
      %p84 = scmp.ne.s32.totalorder %s73, %s74
      %p85 = scmp.eq.s32.totalorder %s27, 0
      %p86 = por %p84, %p85
      %p87 = scmp.ne.s32.totalorder %s73, %s74
      %p88 = scmp.eq.s32.totalorder %s28, 5
      %p89 = por %p87, %p88
      %p91 = scmp.ne.s32.totalorder %s74, %s90
      %p92 = scmp.eq.s32.totalorder %s28, 0
      %p93 = por %p91, %p92
      %s94 = ssub.s32 %s30, %s37
      %s95 = ssub.s32 %s29, %s41
      %s96 = sor.u32 %s94, %s95
      %p97 = scmp.eq.s32.totalorder %s96, 0
      %s99 = sadd.s32 %s98, 1
      %s100 = scalar_select %p97, %s98, %s99
      %p103 = pneg %p97
      %p104 = scmp.eq.s32.totalorder %s22, 5
      %p105 = por %p103, %p104
      %p106 = scmp.ne.s32.totalorder %s98, %s101
      %p107 = scmp.eq.s32.totalorder %s22, 0
      %p108 = por %p106, %p107
      %p109 = scmp.ne.s32.totalorder %s98, %s101
      %p110 = scmp.eq.s32.totalorder %s27, 5
      %p111 = por %p109, %p110
      %p112 = scmp.ne.s32.totalorder %s101, %s102
      %p113 = scmp.eq.s32.totalorder %s27, 0
      %p114 = por %p112, %p113
      %p115 = scmp.ne.s32.totalorder %s101, %s102
      %p116 = scmp.eq.s32.totalorder %s28, 5
      %p117 = por %p115, %p116
      %p119 = scmp.ne.s32.totalorder %s102, %s118
      %p120 = scmp.eq.s32.totalorder %s28, 0
      %p121 = por %p119, %p120
      %s122 = ssub.s32 %s30, %s37
      %s123 = ssub.s32 %s29, %s41
      %s124 = sor.u32 %s122, %s123
      %p125 = scmp.eq.s32.totalorder %s124, 0
      %s127 = sadd.s32 %s126, 1
      %s128 = scalar_select %p125, %s126, %s127
      %p131 = pneg %p125
      %p132 = scmp.eq.s32.totalorder %s22, 5
      %p133 = por %p131, %p132
      %p134 = scmp.ne.s32.totalorder %s126, %s129
      %p135 = scmp.eq.s32.totalorder %s22, 0
      %p136 = por %p134, %p135
      %p137 = scmp.ne.s32.totalorder %s126, %s129
      %p138 = scmp.eq.s32.totalorder %s27, 5
      %p139 = por %p137, %p138
      %p140 = scmp.ne.s32.totalorder %s129, %s130
      %p141 = scmp.eq.s32.totalorder %s27, 0
      %p142 = por %p140, %p141
      %p143 = scmp.ne.s32.totalorder %s129, %s130
      %p144 = scmp.eq.s32.totalorder %s28, 5
      %p145 = por %p143, %p144
      %p147 = scmp.ne.s32.totalorder %s130, %s146
      %p148 = scmp.eq.s32.totalorder %s28, 0
      %p149 = por %p147, %p148
      %p150 = scmp.le.s32.totalorder 1, %s22
      %p151 = scmp.lt.s32.totalorder %s22, 7
      %p152 = pnand %p150, %p151
      %p153 = pneg %p152
      // Predicated region
      $region9: #{_fwd.1} parent=5 // pred_check
        _
      $region10: #{_fwd.1} parent=5 // pred_check_branch
        %155 = sbr.rel (%p152) target = $region12
      $region11: #{_fwd.1} parent=5 // pred_region
        %s156 = ssub.s32 %s22, 1
      $region12: #{_fwd.1} parent=5 // pred_fallthru
        _
      %p157 = scmp.lt.s32.totalorder %s22, 6
      // Predicated region
      $region13: #{_fwd.1} parent=5 // pred_check
        %p158 = pneg %p157
      $region14: #{_fwd.1} parent=5 // pred_check_branch
        %160 = sbr.rel (%p158) target = $region16
      $region15: #{_fwd.1} parent=5 // pred_region
        // Predicated region
        $region17: #{_fwd.1} parent=15 // pred_check
          %p161 = pneg %p54
        $region18: #{_fwd.1} parent=15 // pred_check_branch
          %163 = sbr.rel (%p161) target = $region20
        $region19: #{_fwd.1} parent=15 // pred_region
          %s164 = sand.u32 %s44, 1
          %s165 = scalar_lea.sflag [#allocation4], %s164
          %s166 = sand.u32 %s44, 1
          %s167 = smul.addr %s166, 8
          %s168 = scalar_lea.vmem [#allocation3], %s167
          %s170 = ssub.s32 128, 128
          %171 = vsyncadd %s165, %s170
          %s172 = smul.addr %s30, 128
          %s173 = scalar_lea.hbm %s0, %s172
          %s175 = sshll.u32 %s168, 4
          %s176 = int_to_ptr.vmem [resolvable:$true] %s175
          %178 = dma.hbm_to_vmem [thread:$0]  %s173, 128, %s176, %s165
        $region20: #{_fwd.1} parent=15 // pred_fallthru
          _
        // Predicated region
        $region21: #{_fwd.1} parent=15 // pred_check
          %p179 = pneg %p80
        $region22: #{_fwd.1} parent=15 // pred_check_branch
          %181 = sbr.rel (%p179) target = $region24
        $region23: #{_fwd.1} parent=15 // pred_region
          %s182 = sand.u32 %s70, 1
          %s183 = scalar_lea.sflag [#allocation7], %s182
          %s184 = sand.u32 %s70, 1
          %s185 = smul.addr %s184, 64
          %s186 = scalar_lea.vmem [#allocation6], %s185
          %s188 = ssub.s32 1024, 1024
          %189 = vsyncadd %s183, %s188
          %s190 = smul.addr %s29, 128
          %s191 = scalar_lea.hbm %s1, %s190
          %s192 = sshll.u32 %s186, 4
          %s193 = int_to_ptr.vmem [resolvable:$true] %s192
          %198 = dma.hbm_to_vmem [thread:$0]  %s191, 1024, %s193, %s183, 384, 128, 8
        $region24: #{_fwd.1} parent=15 // pred_fallthru
          _
      $region16: #{_fwd.1} parent=5 // pred_fallthru
        _
      %p199 = scmp.le.s32.totalorder 1, %s22
      %p200 = scmp.lt.s32.totalorder %s22, 7
      %p201 = pnand %p199, %p200
      %p202 = pneg %p201
      // Predicated region
      $region25: #{_fwd.1} parent=5 // pred_check
        _
      $region26: #{_fwd.1} parent=5 // pred_check_branch
        %204 = sbr.rel (%p201) target = $region28
      $region27: #{_fwd.1} parent=5 // pred_region
        %s205 = ssub.s32 %s22, 1
        %s206 = sand.u32 %s47, 1
        %s207 = scalar_lea.sflag [#allocation4], %s206
        %s208 = sand.u32 %s47, 1
        %s209 = smul.addr %s208, 8
        %s210 = scalar_lea.vmem [#allocation3], %s209
        // Predicated region
        $region29: #{_fwd.1} parent=27 // pred_check
          %p211 = pneg %p60
        $region30: #{_fwd.1} parent=27 // pred_check_branch
          %213 = sbr.rel (%p211) target = $region32
        $region31: #{_fwd.1} parent=27 // pred_region
          %214 = dma.done %s207, 128
        $region32: #{_fwd.1} parent=27 // pred_fallthru
          _
        %s215 = sand.u32 %s73, 1
        %s216 = scalar_lea.sflag [#allocation7], %s215
        %s217 = sand.u32 %s73, 1
        %s218 = smul.addr %s217, 64
        %s219 = scalar_lea.vmem [#allocation6], %s218
        // Predicated region
        $region33: #{_fwd.1} parent=27 // pred_check
          %p220 = pneg %p86
        $region34: #{_fwd.1} parent=27 // pred_check_branch
          %222 = sbr.rel (%p220) target = $region36
        $region35: #{_fwd.1} parent=27 // pred_region
          %223 = dma.done %s216, 1024
        $region36: #{_fwd.1} parent=27 // pred_fallthru
          _
        %s224 = sand.u32 %s47, 1
        %s225 = scalar_lea.sflag [#allocation4], %s224
        %s226 = sand.u32 %s47, 1
        %s227 = smul.addr %s226, 8
        %s228 = scalar_lea.vmem [#allocation3], %s227
        %p229 = pneg %p60
        %p230 = pneg %p57
        %s231 = sand.u32 %s73, 1
        %s232 = scalar_lea.sflag [#allocation7], %s231
        %s233 = sand.u32 %s73, 1
        %s234 = smul.addr %s233, 64
        %s235 = scalar_lea.vmem [#allocation6], %s234
        %p236 = pneg %p86
        %p237 = pneg %p83
        %p238 = pneg %p114
        %p239 = pneg %p111
        %s240 = sand.u32 %s101, 1
        %s241 = scalar_lea.sflag [#allocation5], %s240
        %s242 = sand.u32 %s101, 1
        %s243 = smul.addr %s242, 8
        %s244 = scalar_lea.vmem [#allocation8], %s243
        %p245 = pneg %p142
        %p246 = pneg %p139
        %s247 = sand.u32 %s129, 1
        %s248 = scalar_lea.sflag [#allocation10], %s247
        %s249 = sand.u32 %s129, 1
        %s250 = smul.addr %s249, 8
        %s251 = scalar_lea.vmem [#allocation9], %s250
        %v252 = vld [vmem:[%s219] sm:$0xff]
        %v253 = vld [vmem:[%s219 + $0x8] sm:$0xff]
        %v254 = vld [vmem:[%s219 + $0x10] sm:$0xff]
        %v255 = vld [vmem:[%s219 + $0x18] sm:$0xff]
        %v256 = vld [vmem:[%s219 + $0x20] sm:$0xff]
        %v257 = vld [vmem:[%s219 + $0x28] sm:$0xff]
        %v258 = vld [vmem:[%s219 + $0x30] sm:$0xff]
        %v259 = vld [vmem:[%s219 + $0x38] sm:$0xff]
        %p260 = scmp.eq.s32.totalorder %s32, 0
        // Predicated region
        $region37: #{_fwd.1} parent=27 // pred_check
          %p261 = pneg %p260
        $region38: #{_fwd.1} parent=27 // pred_check_branch
          %263 = sbr.rel (%p261) target = $region40
        $region39: #{_fwd.1} parent=27 // pred_region
          %v264 = vmul.f32 %v252, %v252
          %v265 = vmul.f32 %v253, %v253
          %v266 = vmul.f32 %v254, %v254
          %v267 = vmul.f32 %v255, %v255
          %v268 = vmul.f32 %v256, %v256
          %v269 = vmul.f32 %v257, %v257
          %v270 = vmul.f32 %v258, %v258
          %v271 = vmul.f32 %v259, %v259
          %v272 = vadd.f32 %v264, %v265
          %v273 = vadd.f32 %v272, %v266
          %v274 = vadd.f32 %v273, %v267
          %v275 = vadd.f32 %v274, %v268
          %v276 = vadd.f32 %v275, %v269
          %v277 = vadd.f32 %v276, %v270
          %v278 = vadd.f32 %v277, %v271
          %v279 = vrot.slane %v278, 4
          %v280 = vadd.f32 %v278, %v279
          %v281 = vrot.slane %v280, 2
          %v282 = vadd.f32 %v280, %v281
          %v283 = vrot.slane %v282, 1
          %v284 = vadd.f32 %v282, %v283
          %v285 = vrsqrt.pop %v284
          %286 = vst [vmem:[#allocation2] sm:$0x1] %v285
        $region40: #{_fwd.1} parent=27 // pred_fallthru
          _
        %v287 = vld [vmem:[%s210] sm:$0xff]
        %v288 = vmul.f32 %v287, %v287
        %vm289 = vcmask 523264
        %v290 = vsel %vm289, %v288, 0.0
        %291 = vadd.xlane.f32.xlu0 %v290
        %v292 = vpop.xlane.xlu0 %291
        %v293 = vrsqrt.pop %v292
        %v294 = vmul.f32 %v292, %v293
        %v296 = vsel %vm289, %v287, 0
        %298 = vmatprep.subr.mxu0 0.0
        %299 = vmatpush1.msra.mxu0 %v252
        %300 = vmatprep.subr.mxu0 0.0
        %301 = vmatpush1.msra.mxu0 %v253
        %302 = vmatprep.subr.mxu0 0.0
        %303 = vmatpush1.msra.mxu0 %v254
        %304 = vmatprep.subr.mxu0 0.0
        %305 = vmatpush1.msra.mxu0 %v255
        %306 = vmatprep.subr.mxu0 0.0
        %307 = vmatpush1.msra.mxu0 %v256
        %308 = vmatprep.subr.mxu0 0.0
        %309 = vmatpush1.msra.mxu0 %v257
        %310 = vmatprep.subr.mxu0 0.0
        %311 = vmatpush1.msra.mxu0 %v258
        %312 = vmatprep.subr.mxu0 0.0
        %313 = vmatpush1.msra.mxu0 %v259
        %314 = vmatprep.subr.mxu0 0.0
        %315 = vmatpush1.msra.mxu0 0.0
        %316 = vmatprep.subr.mxu0 0.0
        %317 = vmatpush1.msra.mxu0 0.0
        %318 = vmatprep.subr.mxu0 0.0
        %319 = vmatpush1.msra.mxu0 0.0
        %320 = vmatprep.subr.mxu0 0.0
        %321 = vmatpush1.msra.mxu0 0.0
        %322 = vmatprep.subr.mxu0 0.0
        %323 = vmatpush1.msra.mxu0 0.0
        %324 = vmatprep.subr.mxu0 0.0
        %325 = vmatpush1.msra.mxu0 0.0
        %326 = vmatprep.subr.mxu0 0.0
        %327 = vmatpush1.msra.mxu0 0.0
        %328 = vmatprep.subr.mxu0 0.0
        %329 = vmatpush1.msra.mxu0 0.0
        %330 = vmatprep.subr.mxu0 0.0
        %331 = vmatpush1.msra.mxu0 0.0
        %332 = vmatprep.subr.mxu0 0.0
        %333 = vmatpush1.msra.mxu0 0.0
        %334 = vmatprep.subr.mxu0 0.0
        %335 = vmatpush1.msra.mxu0 0.0
        %336 = vmatprep.subr.mxu0 0.0
        %337 = vmatpush1.msra.mxu0 0.0
        %338 = vmatprep.subr.mxu0 0.0
        %339 = vmatpush1.msra.mxu0 0.0
        %340 = vmatprep.subr.mxu0 0.0
        %341 = vmatpush1.msra.mxu0 0.0
        %342 = vmatprep.subr.mxu0 0.0
        %343 = vmatpush1.msra.mxu0 0.0
        %344 = vmatprep.subr.mxu0 0.0
        %345 = vmatpush1.msra.mxu0 0.0
        %346 = vmatprep.subr.mxu0 0.0
        %347 = vmatpush1.msra.mxu0 0.0
        %348 = vmatprep.subr.mxu0 0.0
        %349 = vmatpush1.msra.mxu0 0.0
        %350 = vmatprep.subr.mxu0 0.0
        %351 = vmatpush1.msra.mxu0 0.0
        %352 = vmatprep.subr.mxu0 0.0
        %353 = vmatpush1.msra.mxu0 0.0
        %354 = vmatprep.subr.mxu0 0.0
        %355 = vmatpush1.msra.mxu0 0.0
        %356 = vmatprep.subr.mxu0 0.0
        %357 = vmatpush1.msra.mxu0 0.0
        %358 = vmatprep.subr.mxu0 0.0
        %359 = vmatpush1.msra.mxu0 0.0
        %360 = vmatprep.subr.mxu0 0.0
        %361 = vmatpush1.msra.mxu0 0.0
        %362 = vmatprep.mubr.f32.mxu0 0.0
        %363 = vmatmul.mubr.f32.gmra.mrb[0].mxu0 %v296
        %v364 = vpop.f32.mrb[0].mxu0
        %v365 = vadd.f32 0.0, %v364
        %v366 = vpop.f32.mrb[0].mxu0
        %367 = vdwg.mxu0
        %v368 = vmul.f32 %v365, %v293
        %v369 = vld [vmem:[#allocation2] sm:$0x1]
        %v371 = vlaneseq
        %v372 = vshrl.u32 %v371, 7
        %v373 = vsub.s32 0, %v372
        %v374 = vrot.slane %v369, %v373
        %v376 = vmul.f32 %v368, %v374
        %v377 = vmax.f32 %v376, -1.0
        %v378 = vmin.f32 %v377, 1.0
        %v379 = vmul.f32 %v378, %v378
        %v380 = vmul.f32 %v379, 8.0
        %v381 = vmul.f32 %v380, %v379
        %v382 = vsub.f32 %v381, %v380
        %v383 = vadd.f32 %v382, 1.0
        %vm384 = vcmp.le.f32.partialorder %v378, 0.70710677
        %v385 = vsel %vm384, 1, 0
        %vm386 = vcmp.le.f32.partialorder %v378, 6.123234e-17
        %v387 = vsel %vm386, 1, 0
        %v388 = vadd.s32 %v385, %v387
        %vm389 = vcmp.le.f32.partialorder %v378, -0.70710677
        %v390 = vsel %vm389, 1, 0
        %v391 = vadd.s32 %v388, %v390
        %vm392 = vcmp.le.f32.partialorder %v378, -1.0
        %v393 = vsel %vm392, 1, 0
        %v394 = vadd.s32 %v391, %v393
        %v395 = vand.u32 %v394, 1
        %v396 = vmul.u32 %v395, 2
        %v397 = vsub.s32 1, %v396
        %v398 = vcvt.s32.f32 %v397
        %v399 = vmul.f32 %v398, %v383
        %v400 = vcvt.s32.f32 %v394
        %v401 = vmul.f32 %v400, 2.0
        %v402 = vsub.f32 %v399, %v401
        %v403 = vmul.f32 %v378, %v294
        %404 = vst [vmem:[%s244] sm:$0xff] %v403
        %v405 = vmul.f32 %v402, %v294
        %406 = vst [vmem:[%s251] sm:$0xff] %v405
        %s407 = sand.u32 %s101, 1
        %s408 = scalar_lea.sflag [#allocation5], %s407
        %s409 = sand.u32 %s101, 1
        %s410 = smul.addr %s409, 8
        %s411 = scalar_lea.vmem [#allocation8], %s410
        %s412 = sand.u32 %s129, 1
        %s413 = scalar_lea.sflag [#allocation10], %s412
        %s414 = sand.u32 %s129, 1
        %s415 = smul.addr %s414, 8
        %s416 = scalar_lea.vmem [#allocation9], %s415
        // Predicated region
        $region41: #{_fwd.1} parent=27 // pred_check
          %p417 = pneg %p111
        $region42: #{_fwd.1} parent=27 // pred_check_branch
          %419 = sbr.rel (%p417) target = $region44
        $region43: #{_fwd.1} parent=27 // pred_region
          %s421 = ssub.s32 128, 128
          %422 = vsyncadd %s408, %s421
          %s423 = smul.addr %s32, 3
          %s424 = sadd.s32 %s31, %s423
          %s425 = smul.addr %s424, 128
          %s426 = scalar_lea.hbm %s2, %s425
          %s428 = sshll.u32 %s411, 4
          %s429 = int_to_ptr.vmem [resolvable:$true] %s428
          %431 = dma.vmem_to_hbm [thread:$0]  %s429, 128, %s426, %s408
        $region44: #{_fwd.1} parent=27 // pred_fallthru
          _
        // Predicated region
        $region45: #{_fwd.1} parent=27 // pred_check
          %p432 = pneg %p139
        $region46: #{_fwd.1} parent=27 // pred_check_branch
          %434 = sbr.rel (%p432) target = $region48
        $region47: #{_fwd.1} parent=27 // pred_region
          %s436 = ssub.s32 128, 128
          %437 = vsyncadd %s413, %s436
          %s438 = smul.addr %s32, 3
          %s439 = sadd.s32 %s31, %s438
          %s440 = smul.addr %s439, 128
          %s441 = scalar_lea.hbm %s3, %s440
          %s443 = sshll.u32 %s416, 4
          %s444 = int_to_ptr.vmem [resolvable:$true] %s443
          %446 = dma.vmem_to_hbm [thread:$0]  %s444, 128, %s441, %s413
        $region48: #{_fwd.1} parent=27 // pred_fallthru
          _
      $region28: #{_fwd.1} parent=5 // pred_fallthru
        _
      %p447 = scmp.le.s32.totalorder 2, %s22
      // Predicated region
      $region49: #{_fwd.1} parent=5 // pred_check
        %p448 = pneg %p447
      $region50: #{_fwd.1} parent=5 // pred_check_branch
        %450 = sbr.rel (%p448) target = $region52
      $region51: #{_fwd.1} parent=5 // pred_region
        %s451 = ssub.s32 %s22, 2
        // Predicated region
        $region53: #{_fwd.1} parent=51 // pred_check
          %p452 = pneg %p117
        $region54: #{_fwd.1} parent=51 // pred_check_branch
          %454 = sbr.rel (%p452) target = $region56
        $region55: #{_fwd.1} parent=51 // pred_region
          %s455 = sand.u32 %s102, 1
          %s456 = scalar_lea.sflag [#allocation5], %s455
          %s457 = sand.u32 %s102, 1
          %s458 = smul.addr %s457, 8
          %s459 = scalar_lea.vmem [#allocation8], %s458
          %460 = dma.done %s456, 128
        $region56: #{_fwd.1} parent=51 // pred_fallthru
          _
        // Predicated region
        $region57: #{_fwd.1} parent=51 // pred_check
          %p461 = pneg %p145
        $region58: #{_fwd.1} parent=51 // pred_check_branch
          %463 = sbr.rel (%p461) target = $region60
        $region59: #{_fwd.1} parent=51 // pred_region
          %s464 = sand.u32 %s130, 1
          %s465 = scalar_lea.sflag [#allocation10], %s464
          %s466 = sand.u32 %s130, 1
          %s467 = smul.addr %s466, 8
          %s468 = scalar_lea.vmem [#allocation9], %s467
          %469 = dma.done %s465, 128
        $region60: #{_fwd.1} parent=51 // pred_fallthru
          _
      $region52: #{_fwd.1} parent=5 // pred_fallthru
        _
    $region6: #{_fwd.1} parent=1 // loop_footer
      %s26 = sadd.s32 1, %s22
    $region7: #{_fwd.1} parent=1 // loop_footer_branch
      %21 = sbr.rel target = $region3
    $region8: #{_fwd.1} parent=1 // loop_exit
      _
    %470 = vsyncpa [#allocation4], 1
    %s471 = scalar_lea.sflag [#allocation4], 1
    %472 = vsyncpa %s471, 1
    %473 = vsyncpa [#allocation7], 1
    %s474 = scalar_lea.sflag [#allocation7], 1
    %475 = vsyncpa %s474, 1
    %476 = vsyncpa [#allocation5], 1
    %s477 = scalar_lea.sflag [#allocation5], 1
    %478 = vsyncpa %s477, 1
    %479 = vsyncpa [#allocation10], 1
    %s480 = scalar_lea.sflag [#allocation10], 1
    %481 = vsyncpa %s480, 1

</llo_original>
